<compile_context>
chip_gen: v7x
topology: tpu7x:2x2x1
jax: 0.10.0
libtpu: 0.0.40
codegen_flags: <defaults>
</compile_context>

<pallas_src>
import jax
import jax.numpy as jnp
from jax.experimental import pallas as pl
from jax.experimental.pallas import tpu as pltpu


def _round_up(n, m):
    return ((n + m - 1) // m) * m


def _detect_num_cores():
    """Best-effort TensorCore-per-chip count (2 on v7x, 1 on v5e/v6e). Falls back to 1."""
    try:
        info = pltpu.get_tpu_info()
        for attr in ("num_cores", "num_tensorcores", "tensorcore_count", "cores_per_chip"):
            v = getattr(info, attr, None)
            if isinstance(v, int) and v > 0:
                return v
    except Exception:
        pass
    try:
        v = getattr(jax.devices()[0], "num_cores", None)
        if isinstance(v, int) and v > 0:
            return v
    except Exception:
        pass
    return 1


def _vmem_capacity_bytes():
    """Best-effort per-core VMEM capacity; conservative fallback = v7x's 64 MiB."""
    try:
        v = getattr(pltpu.get_tpu_info(), "vmem_capacity_bytes", None)
        if isinstance(v, int) and v > 0:
            return v
    except Exception:
        pass
    return 64 << 20


def _pick_batch_tile(B, max_tile, num_cores, per_lane_bytes, vmem_capacity):
    """Lane-dense tiles (multiples of 128).  The kernel is step-overhead bound, so use the
    fewest grid steps that (a) fit comfortably in VMEM and (b) give every TensorCore at
    least one step when there are >= 2 TCs (v7x only)."""
    vmem_cap_tile = max(128, ((int(vmem_capacity * 0.6) // per_lane_bytes) // 128) * 128)
    max_tile = max(128, min(_round_up(max_tile, 128), vmem_cap_tile))
    b128 = _round_up(max(B, 1), 128)
    if num_cores >= 2 and b128 > 128:
        per_core = _round_up(-(-b128 // num_cores), 128)  # ceil(b128/num_cores) -> 128-aligned
        return min(max_tile, per_core)
    return min(max_tile, b128)


def qnn_kernel(xT_ref, w1_ref, b1_ref, w2_ref, w3_ref, o_ref):
    """Fused forward: relu(W1@x + b1) -> relu(W2@.) -> W3@.   (b2/b3 folded into W2/W3).

    xT: (Din, bt) f32   W1: (Hp, Din) f32   b1: (Hp, 1) f32
    W2: (Hp, Hp) bf16   W3: (1, Hp) bf16    o: (1, bt) f32
    One padded hidden row has bias 1 and weight 1 onto itself, so it equals 1.0 after
    each ReLU and carries b2/b3 as extra columns of W2/W3.
    """
    xT = xT_ref[...]                                               # stays f32 (input fidelity)
    h1 = jnp.dot(w1_ref[...], xT, preferred_element_type=jnp.float32) + b1_ref[...]
    h1 = jnp.maximum(h1, 0.0)
    h2 = jnp.dot(w2_ref[...], h1.astype(jnp.bfloat16),
                 preferred_element_type=jnp.float32)
    h2 = jnp.maximum(h2, 0.0)
    # NOTE: this 1-row matmul could move to VPU+XLU (w3*h2, sublane-reduce) if bundle
    # dumps ever show it on the critical path; MXU slot is otherwise idle here.
    o_ref[...] = jnp.dot(w3_ref[...], h2.astype(jnp.bfloat16),
                         preferred_element_type=jnp.float32)


def qnn_forward(x, params, *, max_batch_tile=16384, hidden_pad=64, num_cores=None):
    """x: (B, state_dim + control_dim) f32.  params in PyTorch Linear layout:
    (w1 (50, Din), b1 (50,), w2 (50, 50), b2 (50,), w3 (1, 50), b3 (1,)).
    Returns (B, 1) f32."""
    w1, b1, w2, b2, w3, b3 = params
    B, Din = x.shape
    H = w1.shape[0]          # 50
    Dout = w3.shape[0]       # 1
    Hp = max(_round_up(H + 1, 8), hidden_pad)   # 50 -> 64, with >=1 spare row
    one_row = H                                  # padded row pinned to 1.0 (bias carrier)

    # --- Weight packing (tiny arrays; in a real deployment pre-pack these once). ---
    # Padded rows/cols contribute exactly 0 through every layer; row `one_row` equals 1.0
    # after each ReLU and carries b2 / b3 as extra columns of W2 / W3.
    w1p = jnp.zeros((Hp, Din), jnp.float32).at[:H, :].set(w1)
    b1p = (jnp.zeros((Hp, 1), jnp.float32)
           .at[:H, 0].set(b1)
           .at[one_row, 0].set(1.0))
    w2p = (jnp.zeros((Hp, Hp), jnp.float32)
           .at[:H, :H].set(w2)
           .at[:H, one_row].set(b2)
           .at[one_row, one_row].set(1.0))
    w3p = (jnp.zeros((Dout, Hp), jnp.float32)
           .at[:, :H].set(w3)
           .at[:, one_row].set(b3))
    w2b = w2p.astype(jnp.bfloat16)
    w3b = w3p.astype(jnp.bfloat16)

    # --- Single relayout of x: transpose only (no pad, no host-side cast). ---
    xT = x.T                                      # (Din, B) f32

    # --- Tile policy: fewest steps, VMEM- and TC-count-aware. ---
    if num_cores is None:
        num_cores = _detect_num_cores()
    # Per-lane VMEM estimate: double-buffered xT/out blocks + f32 & bf16 copies of h1,h2.
    per_lane_bytes = 2 * Din * 4 + 2 * Dout * 4 + 2 * Hp * (4 + 2)
    vmem_capacity = _vmem_capacity_bytes()
    bt = _pick_batch_tile(B, max_batch_tile, num_cores, per_lane_bytes, vmem_capacity)
    grid = (pl.cdiv(B, bt),)                      # last block may be partial (masked write)

    resident_bytes = 2 * (w1p.size * 4 + b1p.size * 4 + w2b.size * 2 + w3b.size * 2)
    vmem_need = per_lane_bytes * bt + resident_bytes
    vmem_limit = int(min(max(vmem_need * 3 // 2 + (2 << 20), 16 << 20), 60 << 20))

    in_specs = [
        pl.BlockSpec((Din, bt), lambda i: (0, i)),    # xT: tiled over lane-batch
        pl.BlockSpec((Hp, Din), lambda i: (0, 0)),    # W1 (f32): constant block, resident
        pl.BlockSpec((Hp, 1), lambda i: (0, 0)),      # b1 (f32)
        pl.BlockSpec((Hp, Hp), lambda i: (0, 0)),     # W2 (bf16, b2 folded in)
        pl.BlockSpec((Dout, Hp), lambda i: (0, 0)),   # W3 (bf16, b3 folded in)
    ]
    out_specs = pl.BlockSpec((Dout, bt), lambda i: (0, i))   # lane-dense output

    flops = 2 * B * (Din * H + H * H + H * Dout)
    bytes_accessed = (xT.size * 4 + w1p.size * 4 + b1p.size * 4
                      + w2b.size * 2 + w3b.size * 2 + B * Dout * 4)

    oT = pl.pallas_call(
        qnn_kernel,
        out_shape=jax.ShapeDtypeStruct((Dout, B), jnp.float32),
        grid_spec=pltpu.PrefetchScalarGridSpec(
            num_scalar_prefetch=0,
            grid=grid,
            in_specs=in_specs,
            out_specs=out_specs,
        ),
        compiler_params=pltpu.CompilerParams(
            dimension_semantics=("parallel",),
            vmem_limit_bytes=vmem_limit,
        ),
        cost_estimate=pl.CostEstimate(
            flops=flops, transcendentals=0, bytes_accessed=bytes_accessed),
    )(xT, w1p, b1p, w2b, w3b)

    return oT.T   # (B, Dout)


def init_qnn_params(key, state_dim, control_dim, hidden=50):
    """Deterministic synthetic parameters, PyTorch nn.Linear layout: W (out, in), b (out,)."""
    din = state_dim + control_dim
    k = jax.random.split(key, 6)

    def lin(kw, kb, fan_in, fan_out):
        bound = 1.0 / jnp.sqrt(fan_in)
        w = jax.random.uniform(kw, (fan_out, fan_in), jnp.float32, -bound, bound)
        b = jax.random.uniform(kb, (fan_out,), jnp.float32, -bound, bound)
        return w, b

    w1, b1 = lin(k[0], k[1], din, hidden)
    w2, b2 = lin(k[2], k[3], hidden, hidden)
    w3, b3 = lin(k[4], k[5], hidden, 1)
    return (w1, b1, w2, b2, w3, b3)


def qnn_reference_f32(x, params):
    """Full-f32 reference matching the PyTorch module."""
    w1, b1, w2, b2, w3, b3 = params
    h1 = jnp.maximum(x @ w1.T + b1, 0.0)
    h2 = jnp.maximum(h1 @ w2.T + b2, 0.0)
    return h2 @ w3.T + b3


if __name__ == "__main__":
    state_dim, control_dim = 6, 2
    batch = 200   # deliberately not a multiple of 128: exercises the masked partial tile

    key = jax.random.PRNGKey(0)
    kx, kp = jax.random.split(key)
    x = jax.random.normal(kx, (batch, state_dim + control_dim), jnp.float32)
    params = init_qnn_params(kp, state_dim, control_dim)

    out = qnn_forward(x, params)
    out = jax.block_until_ready(out)
    assert out.shape == (batch, 1)
    assert bool(jnp.all(jnp.isfinite(out)))

    # Layer 1 runs in f32 and only layers 2/3 use bf16 weights/activations, so the kernel
    # tracks the full-f32 reference closely.
    ref_f32 = qnn_reference_f32(x, params)
    assert jnp.allclose(out, ref_f32, atol=1e-2, rtol=1e-2), "mismatch vs f32 reference"

    print("KERNEL_OK")
</pallas_src>

<mosaic_0001>
module attributes {stable_mosaic.version = 11 : i64} {
  func.func @qnn_kernel(%arg0: i32, %arg1: memref<8x256xf32, #tpu.memory_space<vmem>>, %arg2: memref<64x8xf32, #tpu.memory_space<vmem>>, %arg3: memref<64x1xf32, #tpu.memory_space<vmem>>, %arg4: memref<64x64xbf16, #tpu.memory_space<vmem>>, %arg5: memref<1x64xbf16, #tpu.memory_space<vmem>>, %arg6: memref<1x256xf32, #tpu.memory_space<vmem>>) attributes {dimension_semantics = [#tpu.dimension_semantics<parallel>], iteration_bounds = array<i64: 1>, scalar_prefetch = 0 : i64, scratch_operands = 0 : i64, tpu.core_type = #tpu.core_type<tc>, window_params = [{transform_indices = @transform_0, window_bounds = array<i64: 8, 256>}, {pipeline_mode = #tpu.pipeline_mode<synchronous>, transform_indices = @transform_1, window_bounds = array<i64: 64, 8>}, {pipeline_mode = #tpu.pipeline_mode<synchronous>, transform_indices = @transform_2, window_bounds = array<i64: 64, 1>}, {pipeline_mode = #tpu.pipeline_mode<synchronous>, transform_indices = @transform_3, window_bounds = array<i64: 64, 64>}, {pipeline_mode = #tpu.pipeline_mode<synchronous>, transform_indices = @transform_4, window_bounds = array<i64: 1, 64>}, {transform_indices = @transform_5, window_bounds = array<i64: 1, 256>}]} {
    %c0 = arith.constant 0 : index
    %c0_0 = arith.constant 0 : index
    %0 = vector.load %arg1[%c0, %c0_0] : memref<8x256xf32, #tpu.memory_space<vmem>>, vector<8x256xf32>
    %c0_1 = arith.constant 0 : index
    %c0_2 = arith.constant 0 : index
    %1 = vector.load %arg2[%c0_1, %c0_2] : memref<64x8xf32, #tpu.memory_space<vmem>>, vector<64x8xf32>
    %cst = arith.constant dense<0.000000e+00> : vector<64x256xf32>
    %2 = tpu.matmul %1, %0, %cst {dimension_numbers = #tpu.dot_dimension_numbers<[1], [0], [0], [1], [0, 0, 1, 1], [], []>} : vector<64x8xf32>, vector<8x256xf32>, vector<64x256xf32> -> vector<64x256xf32>
    %c0_3 = arith.constant 0 : index
    %c0_4 = arith.constant 0 : index
    %3 = vector.load %arg3[%c0_3, %c0_4] : memref<64x1xf32, #tpu.memory_space<vmem>>, vector<64x1xf32>
    %4 = vector.broadcast %3 : vector<64x1xf32> to vector<64x256xf32>
    %5 = arith.addf %2, %4 : vector<64x256xf32>
    %cst_5 = arith.constant 0.000000e+00 : f32
    %6 = vector.broadcast %cst_5 : f32 to vector<64x256xf32>
    %7 = arith.maximumf %5, %6 : vector<64x256xf32>
    %c0_6 = arith.constant 0 : index
    %c0_7 = arith.constant 0 : index
    %8 = vector.load %arg4[%c0_6, %c0_7] : memref<64x64xbf16, #tpu.memory_space<vmem>>, vector<64x64xbf16>
    %9 = arith.truncf %7 : vector<64x256xf32> to vector<64x256xbf16>
    %cst_8 = arith.constant dense<0.000000e+00> : vector<64x256xf32>
    %10 = tpu.matmul %8, %9, %cst_8 {dimension_numbers = #tpu.dot_dimension_numbers<[1], [0], [0], [1], [0, 0, 1, 1], [], []>} : vector<64x64xbf16>, vector<64x256xbf16>, vector<64x256xf32> -> vector<64x256xf32>
    %cst_9 = arith.constant 0.000000e+00 : f32
    %11 = vector.broadcast %cst_9 : f32 to vector<64x256xf32>
    %12 = arith.maximumf %10, %11 : vector<64x256xf32>
    %c0_10 = arith.constant 0 : index
    %c0_11 = arith.constant 0 : index
    %13 = vector.load %arg5[%c0_10, %c0_11] : memref<1x64xbf16, #tpu.memory_space<vmem>>, vector<1x64xbf16>
    %14 = arith.truncf %12 : vector<64x256xf32> to vector<64x256xbf16>
    %cst_12 = arith.constant dense<0.000000e+00> : vector<1x256xf32>
    %15 = tpu.matmul %13, %14, %cst_12 {dimension_numbers = #tpu.dot_dimension_numbers<[1], [0], [0], [1], [0, 0, 1, 1], [], []>} : vector<1x64xbf16>, vector<64x256xbf16>, vector<1x256xf32> -> vector<1x256xf32>
    %c0_13 = arith.constant 0 : index
    %c0_14 = arith.constant 0 : index
    %16 = vector.load %arg6[%c0_13, %c0_14] : memref<1x256xf32, #tpu.memory_space<vmem>>, vector<1x256xf32>
    tpu.vector_store %arg6[%c0_13, %c0_14], %15 {strides = array<i32>} : memref<1x256xf32, #tpu.memory_space<vmem>>, vector<1x256xf32>,
    return
  }
  func.func @transform_0(%arg0: i32) -> (i32, i32) {
    %c0_i32 = arith.constant 0 : i32
    %c0_i32_0 = arith.constant 0 : i32
    return %c0_i32, %arg0 : i32, i32
  }
  func.func @transform_1(%arg0: i32) -> (i32, i32) {
    %c0_i32 = arith.constant 0 : i32
    %c0_i32_0 = arith.constant 0 : i32
    %c0_i32_1 = arith.constant 0 : i32
    return %c0_i32, %c0_i32_0 : i32, i32
  }
  func.func @transform_2(%arg0: i32) -> (i32, i32) {
    %c0_i32 = arith.constant 0 : i32
    %c0_i32_0 = arith.constant 0 : i32
    %c0_i32_1 = arith.constant 0 : i32
    return %c0_i32, %c0_i32_0 : i32, i32
  }
  func.func @transform_3(%arg0: i32) -> (i32, i32) {
    %c0_i32 = arith.constant 0 : i32
    %c0_i32_0 = arith.constant 0 : i32
    %c0_i32_1 = arith.constant 0 : i32
    return %c0_i32, %c0_i32_0 : i32, i32
  }
  func.func @transform_4(%arg0: i32) -> (i32, i32) {
    %c0_i32 = arith.constant 0 : i32
    %c0_i32_0 = arith.constant 0 : i32
    %c0_i32_1 = arith.constant 0 : i32
    return %c0_i32, %c0_i32_0 : i32, i32
  }
  func.func @transform_5(%arg0: i32) -> (i32, i32) {
    %c0_i32 = arith.constant 0 : i32
    %c0_i32_0 = arith.constant 0 : i32
    return %c0_i32, %arg0 : i32, i32
  }
}

</mosaic_0001>

<llo_original>
// kernel: tpu_custom_call.1
$region0: #{tpu_custom_call.1}
  #allocation0 [shape = 'u32[]', space=smem, size = 0x4, offset = 0x4, fixed_abs, tag = 'smem constant byte address 0x4 - core index']
  #allocation1 [shape = 'u32[144,128]{1,0:T(1,128)}', space=vmem, size = 0x12000, scoped, tag = 'internal scratch']
  %s0 = inlined_call_operand.vmem [shape: f32[8,200], index: 0, kind: input, shape index: {}]
  %s1 = inlined_call_operand.vmem [shape: f32[64,8], index: 1, kind: input, shape index: {}]
  %s2 = inlined_call_operand.vmem [shape: f32[64,1], index: 2, kind: input, shape index: {}]
  %s3 = inlined_call_operand.vmem [shape: bf16[64,64], index: 3, kind: input, shape index: {}]
  %s4 = inlined_call_operand.vmem [shape: bf16[1,64], index: 4, kind: input, shape index: {}]
  %s5 = inlined_call_operand.hbm [shape: f32[1,200], index: 5, kind: output, shape index: {}]
  %s6 = sld [smem:[#allocation0]]
  $region30: #{tpu_custom_call.1} parent=0
    _
  %s8 = ssub.s32 1, %s6
  %s9 = scalar_select 0, %s8, %s6
  $region1: #{tpu_custom_call.1} parent=0
    #allocation2 [shape = 'u8[1024]{0}', space=vmem, size = 0x400, scoped, tag = 'output window, operand 0, single buffered']
    #allocation3 [shape = 's32[1]{0}', space=sflag, size = 0x4, scoped, tag = 'scoped memory for tpu_custom_call.1']
    %10 = vsyncpa [#allocation3], 0
    // Predicated region
    $region2: #{tpu_custom_call.1} parent=1 // pred_check
      _
    $region3: #{tpu_custom_call.1} parent=1 // pred_check_branch
      %12 = sbr.rel (0) target = $region5
    $region4: #{tpu_custom_call.1} parent=1 // pred_region
      _
    $region5: #{tpu_custom_call.1} parent=1 // pred_fallthru
      _
    // Predicated region
    $region6: #{tpu_custom_call.1} parent=1 // pred_check
      _
    $region7: #{tpu_custom_call.1} parent=1 // pred_check_branch
      %14 = sbr.rel (0) target = $region9
    $region8: #{tpu_custom_call.1} parent=1 // pred_region
      _
    $region9: #{tpu_custom_call.1} parent=1 // pred_fallthru
      _
    // Predicated region
    $region10: #{tpu_custom_call.1} parent=1 // pred_check
      _
    $region11: #{tpu_custom_call.1} parent=1 // pred_check_branch
      %16 = sbr.rel (0) target = $region13
    $region12: #{tpu_custom_call.1} parent=1 // pred_region
      _
    $region13: #{tpu_custom_call.1} parent=1 // pred_fallthru
      _
    // Predicated region
    $region14: #{tpu_custom_call.1} parent=1 // pred_check
      _
    $region15: #{tpu_custom_call.1} parent=1 // pred_check_branch
      %18 = sbr.rel (0) target = $region17
    $region16: #{tpu_custom_call.1} parent=1 // pred_region
      _
    $region17: #{tpu_custom_call.1} parent=1 // pred_fallthru
      _
    // Predicated region
    $region18: #{tpu_custom_call.1} parent=1 // pred_check
      _
    $region19: #{tpu_custom_call.1} parent=1 // pred_check_branch
      %20 = sbr.rel (0) target = $region21
    $region20: #{tpu_custom_call.1} parent=1 // pred_region
      _
    $region21: #{tpu_custom_call.1} parent=1 // pred_fallthru
      _
    %v22 = vld [vmem:[%s0] sm:$0xff]
    %v23 = vld [vmem:[%s0 + $0x8] sm:$0xff]
    %v24 = vld [vmem:[%s1] sm:$0xff]
    %v25 = vld [vmem:[%s1 + $0x8] sm:$0xff]
    %v26 = vld [vmem:[%s1 + $0x10] sm:$0xff]
    %v27 = vld [vmem:[%s1 + $0x18] sm:$0xff]
    %v28 = vld [vmem:[%s1 + $0x20] sm:$0xff]
    %v29 = vld [vmem:[%s1 + $0x28] sm:$0xff]
    %v30 = vld [vmem:[%s1 + $0x30] sm:$0xff]
    %v31 = vld [vmem:[%s1 + $0x38] sm:$0xff]
    %v32 = vld [vmem:[%s2] sm:$0xff]
    %v33 = vld [vmem:[%s2 + $0x8] sm:$0xff]
    %v34 = vld [vmem:[%s2 + $0x10] sm:$0xff]
    %v35 = vld [vmem:[%s2 + $0x18] sm:$0xff]
    %v36 = vld [vmem:[%s2 + $0x20] sm:$0xff]
    %v37 = vld [vmem:[%s2 + $0x28] sm:$0xff]
    %v38 = vld [vmem:[%s2 + $0x30] sm:$0xff]
    %v39 = vld [vmem:[%s2 + $0x38] sm:$0xff]
    %41 = vset.pattern.permute.xlu0 0
    %42 = vperm.xlu0 %41, %v32
    %v43 = vpop.permute.xlu0 %42
    %46 = vset.pattern.permute.xlu0 0
    %47 = vperm.xlu0 %46, %v33
    %v48 = vpop.permute.xlu0 %47
    %51 = vset.pattern.permute.xlu0 0
    %52 = vperm.xlu0 %51, %v34
    %v53 = vpop.permute.xlu0 %52
    %56 = vset.pattern.permute.xlu0 0
    %57 = vperm.xlu0 %56, %v35
    %v58 = vpop.permute.xlu0 %57
    %61 = vset.pattern.permute.xlu0 0
    %62 = vperm.xlu0 %61, %v36
    %v63 = vpop.permute.xlu0 %62
    %66 = vset.pattern.permute.xlu0 0
    %67 = vperm.xlu0 %66, %v37
    %v68 = vpop.permute.xlu0 %67
    %71 = vset.pattern.permute.xlu0 0
    %72 = vperm.xlu0 %71, %v38
    %v73 = vpop.permute.xlu0 %72
    %76 = vset.pattern.permute.xlu0 0
    %77 = vperm.xlu0 %76, %v39
    %v78 = vpop.permute.xlu0 %77
    %vm80 = vcmask 64512
    %v82 = vsel %vm80, %v24, 0
    %v85 = vsel %vm80, %v25, 0
    %v88 = vsel %vm80, %v26, 0
    %v91 = vsel %vm80, %v27, 0
    %v94 = vsel %vm80, %v28, 0
    %v97 = vsel %vm80, %v29, 0
    %v100 = vsel %vm80, %v30, 0
    %v103 = vsel %vm80, %v31, 0
    %105 = vmatprep.subr.mxu0 %v23
    %106 = vmatpush1.msra.mxu0 %v22
    %107 = vmatprep.subr.mxu0 0.0
    %108 = vmatpush1.msra.mxu0 0.0
    %109 = vmatprep.subr.mxu0 0.0
    %110 = vmatpush1.msra.mxu0 0.0
    %111 = vmatprep.subr.mxu0 0.0
    %112 = vmatpush1.msra.mxu0 0.0
    %113 = vmatprep.subr.mxu0 0.0
    %114 = vmatpush1.msra.mxu0 0.0
    %115 = vmatprep.subr.mxu0 0.0
    %116 = vmatpush1.msra.mxu0 0.0
    %117 = vmatprep.subr.mxu0 0.0
    %118 = vmatpush1.msra.mxu0 0.0
    %119 = vmatprep.subr.mxu0 0.0
    %120 = vmatpush1.msra.mxu0 0.0
    %121 = vmatprep.subr.mxu0 0.0
    %122 = vmatpush1.msra.mxu0 0.0
    %123 = vmatprep.subr.mxu0 0.0
    %124 = vmatpush1.msra.mxu0 0.0
    %125 = vmatprep.subr.mxu0 0.0
    %126 = vmatpush1.msra.mxu0 0.0
    %127 = vmatprep.subr.mxu0 0.0
    %128 = vmatpush1.msra.mxu0 0.0
    %129 = vmatprep.subr.mxu0 0.0
    %130 = vmatpush1.msra.mxu0 0.0
    %131 = vmatprep.subr.mxu0 0.0
    %132 = vmatpush1.msra.mxu0 0.0
    %133 = vmatprep.subr.mxu0 0.0
    %134 = vmatpush1.msra.mxu0 0.0
    %135 = vmatprep.subr.mxu0 0.0
    %136 = vmatpush1.msra.mxu0 0.0
    %137 = vmatprep.subr.mxu0 0.0
    %138 = vmatpush1.msra.mxu0 0.0
    %139 = vmatprep.subr.mxu0 0.0
    %140 = vmatpush1.msra.mxu0 0.0
    %141 = vmatprep.subr.mxu0 0.0
    %142 = vmatpush1.msra.mxu0 0.0
    %143 = vmatprep.subr.mxu0 0.0
    %144 = vmatpush1.msra.mxu0 0.0
    %145 = vmatprep.subr.mxu0 0.0
    %146 = vmatpush1.msra.mxu0 0.0
    %147 = vmatprep.subr.mxu0 0.0
    %148 = vmatpush1.msra.mxu0 0.0
    %149 = vmatprep.subr.mxu0 0.0
    %150 = vmatpush1.msra.mxu0 0.0
    %151 = vmatprep.subr.mxu0 0.0
    %152 = vmatpush1.msra.mxu0 0.0
    %153 = vmatprep.subr.mxu0 0.0
    %154 = vmatpush1.msra.mxu0 0.0
    %155 = vmatprep.subr.mxu0 0.0
    %156 = vmatpush1.msra.mxu0 0.0
    %157 = vmatprep.subr.mxu0 0.0
    %158 = vmatpush1.msra.mxu0 0.0
    %159 = vmatprep.subr.mxu0 0.0
    %160 = vmatpush1.msra.mxu0 0.0
    %161 = vmatprep.subr.mxu0 0.0
    %162 = vmatpush1.msra.mxu0 0.0
    %163 = vmatprep.subr.mxu0 0.0
    %164 = vmatpush1.msra.mxu0 0.0
    %165 = vmatprep.subr.mxu0 0.0
    %166 = vmatpush1.msra.mxu0 0.0
    %167 = vmatprep.subr.mxu0 0.0
    %168 = vmatpush1.msra.mxu0 0.0
    %169 = vmatprep.mubr.f32.mxu0 0.0
    %170 = vmatmul.mubr.f32.gmra.mrb[0].mxu0 %v82
    %v171 = vpop.f32.mrb[0].mxu0
    %v172 = vadd.f32 %v43, %v171
    %v173 = vpop.f32.mrb[0].mxu0
    %v174 = vadd.f32 %v43, %v173
    %175 = vmatprep.mubr.f32.mxu0 0.0
    %176 = vmatmul.mubr.f32.gmra.mrb[0].mxu0 %v85
    %v177 = vpop.f32.mrb[0].mxu0
    %v178 = vadd.f32 %v48, %v177
    %v179 = vpop.f32.mrb[0].mxu0
    %v180 = vadd.f32 %v48, %v179
    %181 = vmatprep.mubr.f32.mxu0 0.0
    %182 = vmatmul.mubr.f32.gmra.mrb[0].mxu0 %v88
    %v183 = vpop.f32.mrb[0].mxu0
    %v184 = vadd.f32 %v53, %v183
    %v185 = vpop.f32.mrb[0].mxu0
    %v186 = vadd.f32 %v53, %v185
    %187 = vmatprep.mubr.f32.mxu0 0.0
    %188 = vmatmul.mubr.f32.gmra.mrb[0].mxu0 %v91
    %v189 = vpop.f32.mrb[0].mxu0
    %v190 = vadd.f32 %v58, %v189
    %v191 = vpop.f32.mrb[0].mxu0
    %v192 = vadd.f32 %v58, %v191
    %193 = vmatprep.mubr.f32.mxu0 0.0
    %194 = vmatmul.mubr.f32.gmra.mrb[0].mxu0 %v94
    %v195 = vpop.f32.mrb[0].mxu0
    %v196 = vadd.f32 %v63, %v195
    %v197 = vpop.f32.mrb[0].mxu0
    %v198 = vadd.f32 %v63, %v197
    %199 = vmatprep.mubr.f32.mxu0 0.0
    %200 = vmatmul.mubr.f32.gmra.mrb[0].mxu0 %v97
    %v201 = vpop.f32.mrb[0].mxu0
    %v202 = vadd.f32 %v68, %v201
    %v203 = vpop.f32.mrb[0].mxu0
    %v204 = vadd.f32 %v68, %v203
    %205 = vmatprep.mubr.f32.mxu0 0.0
    %206 = vmatmul.mubr.f32.gmra.mrb[0].mxu0 %v100
    %v207 = vpop.f32.mrb[0].mxu0
    %v208 = vadd.f32 %v73, %v207
    %v209 = vpop.f32.mrb[0].mxu0
    %v210 = vadd.f32 %v73, %v209
    %211 = vmatprep.mubr.f32.mxu0 0.0
    %212 = vmatmul.mubr.f32.gmra.mrb[0].mxu0 %v103
    %v213 = vpop.f32.mrb[0].mxu0
    %v214 = vadd.f32 %v78, %v213
    %v215 = vpop.f32.mrb[0].mxu0
    %v216 = vadd.f32 %v78, %v215
    %217 = vdwg.mxu0
    %v218 = vmax.f32 %v172, 0.0
    %v219 = vmax.f32 %v174, 0.0
    %v220 = vmax.f32 %v178, 0.0
    %v221 = vmax.f32 %v180, 0.0
    %v222 = vmax.f32 %v184, 0.0
    %v223 = vmax.f32 %v186, 0.0
    %v224 = vmax.f32 %v190, 0.0
    %v225 = vmax.f32 %v192, 0.0
    %v226 = vmax.f32 %v196, 0.0
    %v227 = vmax.f32 %v198, 0.0
    %v228 = vmax.f32 %v202, 0.0
    %v229 = vmax.f32 %v204, 0.0
    %v230 = vmax.f32 %v208, 0.0
    %v231 = vmax.f32 %v210, 0.0
    %v232 = vmax.f32 %v214, 0.0
    %v233 = vmax.f32 %v216, 0.0
    %v234 = vld [vmem:[%s3] sm:$0xf]
    %v235 = vld [vmem:[%s3 + $0x4] sm:$0xf]
    %v236 = vld [vmem:[%s3 + $0x8] sm:$0xf]
    %v237 = vld [vmem:[%s3 + $0xc] sm:$0xf]
    %v238 = vld [vmem:[%s3 + $0x10] sm:$0xf]
    %v239 = vld [vmem:[%s3 + $0x14] sm:$0xf]
    %v240 = vld [vmem:[%s3 + $0x18] sm:$0xf]
    %v241 = vld [vmem:[%s3 + $0x1c] sm:$0xf]
    %v242 = vpack.c.bf16 %v220, %v218
    %v243 = vpack.c.bf16 %v221, %v219
    %v244 = vpack.c.bf16 %v224, %v222
    %v245 = vpack.c.bf16 %v225, %v223
    %v246 = vpack.c.bf16 %v228, %v226
    %v247 = vpack.c.bf16 %v229, %v227
    %v248 = vpack.c.bf16 %v232, %v230
    %v249 = vpack.c.bf16 %v233, %v231
    %v258 = vunpack.c.l.b16 %v234
    %v259 = vunpack.c.l.b16 %v235
    %v260 = vunpack.c.l.b16 %v236
    %v261 = vunpack.c.l.b16 %v237
    %v262 = vunpack.c.l.b16 %v238
    %v263 = vunpack.c.l.b16 %v239
    %v264 = vunpack.c.l.b16 %v240
    %v265 = vunpack.c.l.b16 %v241
    %v266 = vpack.c.b16 %v259, %v258
    %v267 = vpack.c.b16 %v261, %v260
    %v268 = vpack.c.b16 %v263, %v262
    %v269 = vpack.c.b16 %v265, %v264
    %vm270 = vcmask 523264
    %v272 = vsel %vm270, %v266, 0
    %v275 = vsel %vm270, %v267, 0
    %v278 = vsel %vm270, %v268, 0
    %v281 = vsel %vm270, %v269, 0
    %283 = vmatprep.subr.bf16.mxu0 %v243
    %284 = vmatpush1.bf16.msra.mxu0 %v242
    %285 = vmatprep.subr.bf16.mxu0 %v245
    %286 = vmatpush1.bf16.msra.mxu0 %v244
    %287 = vmatprep.subr.bf16.mxu0 %v247
    %288 = vmatpush1.bf16.msra.mxu0 %v246
    %289 = vmatprep.subr.bf16.mxu0 %v249
    %290 = vmatpush1.bf16.msra.mxu0 %v248
    %291 = vmatprep.subr.bf16.mxu0 0
    %292 = vmatpush1.bf16.msra.mxu0 0
    %293 = vmatprep.subr.bf16.mxu0 0
    %294 = vmatpush1.bf16.msra.mxu0 0
    %295 = vmatprep.subr.bf16.mxu0 0
    %296 = vmatpush1.bf16.msra.mxu0 0
    %297 = vmatprep.subr.bf16.mxu0 0
    %298 = vmatpush1.bf16.msra.mxu0 0
    %299 = vmatprep.subr.bf16.mxu0 0
    %300 = vmatpush1.bf16.msra.mxu0 0
    %301 = vmatprep.subr.bf16.mxu0 0
    %302 = vmatpush1.bf16.msra.mxu0 0
    %303 = vmatprep.subr.bf16.mxu0 0
    %304 = vmatpush1.bf16.msra.mxu0 0
    %305 = vmatprep.subr.bf16.mxu0 0
    %306 = vmatpush1.bf16.msra.mxu0 0
    %307 = vmatprep.subr.bf16.mxu0 0
    %308 = vmatpush1.bf16.msra.mxu0 0
    %309 = vmatprep.subr.bf16.mxu0 0
    %310 = vmatpush1.bf16.msra.mxu0 0
    %311 = vmatprep.subr.bf16.mxu0 0
    %312 = vmatpush1.bf16.msra.mxu0 0
    %313 = vmatprep.subr.bf16.mxu0 0
    %314 = vmatpush1.bf16.msra.mxu0 0
    %315 = vmatprep.mubr.bf16.mxu0 0
    %316 = vmatmul.mubr.bf16.gmra.mrb[0].mxu0 %v272
    %v317 = vpop.f32.mrb[0].mxu0
    %v318 = vadd.f32 0.0, %v317
    %v319 = vpop.f32.mrb[0].mxu0
    %v320 = vadd.f32 0.0, %v319
    %v321 = vpop.f32.mrb[0].mxu0
    %v322 = vadd.f32 0.0, %v321
    %v323 = vpop.f32.mrb[0].mxu0
    %v324 = vadd.f32 0.0, %v323
    %325 = vmatprep.mubr.bf16.mxu0 0
    %326 = vmatmul.mubr.bf16.gmra.mrb[0].mxu0 %v275
    %v327 = vpop.f32.mrb[0].mxu0
    %v328 = vadd.f32 0.0, %v327
    %v329 = vpop.f32.mrb[0].mxu0
    %v330 = vadd.f32 0.0, %v329
    %v331 = vpop.f32.mrb[0].mxu0
    %v332 = vadd.f32 0.0, %v331
    %v333 = vpop.f32.mrb[0].mxu0
    %v334 = vadd.f32 0.0, %v333
    %335 = vmatprep.mubr.bf16.mxu0 0
    %336 = vmatmul.mubr.bf16.gmra.mrb[0].mxu0 %v278
    %v337 = vpop.f32.mrb[0].mxu0
    %v338 = vadd.f32 0.0, %v337
    %v339 = vpop.f32.mrb[0].mxu0
    %v340 = vadd.f32 0.0, %v339
    %v341 = vpop.f32.mrb[0].mxu0
    %v342 = vadd.f32 0.0, %v341
    %v343 = vpop.f32.mrb[0].mxu0
    %v344 = vadd.f32 0.0, %v343
    %345 = vmatprep.mubr.bf16.mxu0 0
    %346 = vmatmul.mubr.bf16.gmra.mrb[0].mxu0 %v281
    %v347 = vpop.f32.mrb[0].mxu0
    %v348 = vadd.f32 0.0, %v347
    %v349 = vpop.f32.mrb[0].mxu0
    %v350 = vadd.f32 0.0, %v349
    %v351 = vpop.f32.mrb[0].mxu0
    %v352 = vadd.f32 0.0, %v351
    %v353 = vpop.f32.mrb[0].mxu0
    %v354 = vadd.f32 0.0, %v353
    %355 = vdwg.mxu0
    %v356 = vmax.f32 %v318, 0.0
    %v357 = vmax.f32 %v320, 0.0
    %v358 = vmax.f32 %v322, 0.0
    %v359 = vmax.f32 %v324, 0.0
    %v360 = vmax.f32 %v328, 0.0
    %v361 = vmax.f32 %v330, 0.0
    %v362 = vmax.f32 %v332, 0.0
    %v363 = vmax.f32 %v334, 0.0
    %v364 = vmax.f32 %v338, 0.0
    %v365 = vmax.f32 %v340, 0.0
    %v366 = vmax.f32 %v342, 0.0
    %v367 = vmax.f32 %v344, 0.0
    %v368 = vmax.f32 %v348, 0.0
    %v369 = vmax.f32 %v350, 0.0
    %v370 = vmax.f32 %v352, 0.0
    %v371 = vmax.f32 %v354, 0.0
    %v372 = vld [vmem:[%s4] sm:$0x1]
    %v373 = vpack.c.bf16 %v358, %v356
    %v374 = vpack.c.bf16 %v359, %v357
    %v375 = vpack.c.bf16 %v362, %v360
    %v376 = vpack.c.bf16 %v363, %v361
    %v377 = vpack.c.bf16 %v366, %v364
    %v378 = vpack.c.bf16 %v367, %v365
    %v379 = vpack.c.bf16 %v370, %v368
    %v380 = vpack.c.bf16 %v371, %v369
    %v382 = vsel %vm270, %v372, 0
    %384 = vmatprep.subr.bf16.mxu0 %v374
    %385 = vmatpush1.bf16.msra.mxu0 %v373
    %386 = vmatprep.subr.bf16.mxu0 %v376
    %387 = vmatpush1.bf16.msra.mxu0 %v375
    %388 = vmatprep.subr.bf16.mxu0 %v378
    %389 = vmatpush1.bf16.msra.mxu0 %v377
    %390 = vmatprep.subr.bf16.mxu0 %v380
    %391 = vmatpush1.bf16.msra.mxu0 %v379
    %392 = vmatprep.subr.bf16.mxu0 0
    %393 = vmatpush1.bf16.msra.mxu0 0
    %394 = vmatprep.subr.bf16.mxu0 0
    %395 = vmatpush1.bf16.msra.mxu0 0
    %396 = vmatprep.subr.bf16.mxu0 0
    %397 = vmatpush1.bf16.msra.mxu0 0
    %398 = vmatprep.subr.bf16.mxu0 0
    %399 = vmatpush1.bf16.msra.mxu0 0
    %400 = vmatprep.subr.bf16.mxu0 0
    %401 = vmatpush1.bf16.msra.mxu0 0
    %402 = vmatprep.subr.bf16.mxu0 0
    %403 = vmatpush1.bf16.msra.mxu0 0
    %404 = vmatprep.subr.bf16.mxu0 0
    %405 = vmatpush1.bf16.msra.mxu0 0
    %406 = vmatprep.subr.bf16.mxu0 0
    %407 = vmatpush1.bf16.msra.mxu0 0
    %408 = vmatprep.subr.bf16.mxu0 0
    %409 = vmatpush1.bf16.msra.mxu0 0
    %410 = vmatprep.subr.bf16.mxu0 0
    %411 = vmatpush1.bf16.msra.mxu0 0
    %412 = vmatprep.subr.bf16.mxu0 0
    %413 = vmatpush1.bf16.msra.mxu0 0
    %414 = vmatprep.subr.bf16.mxu0 0
    %415 = vmatpush1.bf16.msra.mxu0 0
    %416 = vmatprep.mubr.bf16.mxu0 0
    %417 = vmatmul.mubr.bf16.gmra.mrb[0].mxu0 %v382
    %v418 = vpop.f32.mrb[0].mxu0
    %v419 = vadd.f32 0.0, %v418
    %v420 = vpop.f32.mrb[0].mxu0
    %v421 = vadd.f32 0.0, %v420
    %v422 = vpop.f32.mrb[0].mxu0
    %v423 = vpop.f32.mrb[0].mxu0
    %424 = vdwg.mxu0
    %v427 = vcombine.low %v419, %v421
    %v429 = vunpack.c.l.s4 1966171168
    %v430 = vunpack.c.0.s8 %v429
    %v431 = vlaneseq
    %v432 = vshrl.u32 %v431, 7
    %v433 = vsub.s32 %v430, %v432
    %v434 = vrot.slane %v427, %v433
    %v436 = vunpack.c.l.s4 1966171168
    %v437 = vunpack.c.0.s8 %v436
    %v438 = vlaneseq
    %v439 = vshrl.u32 %v438, 7
    %v440 = vsub.s32 %v437, %v439
    %v441 = vrot.slane %v434, %v440
    %v443 = vlaneseq
    %vm444 = vcmp.ge.s32.totalorder %v443, 0
    %vm445 = vcmp.lt.s32.totalorder %v443, 256
    %vm446 = vmand %vm444, %vm445
    %447 = vst.msk [vmem:[#allocation2] sm:$0x3] %vm446, %v441
    // Predicated region
    $region22: #{tpu_custom_call.1} parent=1 // pred_check
      _
    $region23: #{tpu_custom_call.1} parent=1 // pred_check_branch
      %449 = sbr.rel (0) target = $region25
    $region24: #{tpu_custom_call.1} parent=1 // pred_region
      %s451 = ssub.s32 32, 32
      %452 = vsyncadd [#allocation3], %s451
      %s454 = sshll.u32 [#allocation2], 4
      %s455 = int_to_ptr.vmem [resolvable:$true] %s454
      %457 = dma.vmem_to_hbm [thread:$0]  %s455, 32, %s5, [#allocation3]
    $region25: #{tpu_custom_call.1} parent=1 // pred_fallthru
      _
    // Predicated region
    $region26: #{tpu_custom_call.1} parent=1 // pred_check
      _
    $region27: #{tpu_custom_call.1} parent=1 // pred_check_branch
      %459 = sbr.rel (0) target = $region29
    $region28: #{tpu_custom_call.1} parent=1 // pred_region
      %460 = dma.done [#allocation3], 32
    $region29: #{tpu_custom_call.1} parent=1 // pred_fallthru
      _
    %461 = vsyncpa [#allocation3], 1

</llo_original>
